<compile_context>
chip_gen: v6e
topology: v6e:2x2x1
jax: 0.10.0
libtpu: 0.0.40
codegen_flags: <defaults>
</compile_context>

<pallas_src>
import functools

import jax
import jax.numpy as jnp
from jax import lax
from jax.experimental import pallas as pl
from jax.experimental.pallas import tpu as pltpu

EPS = 1e-5          # nn.InstanceNorm2d default eps
NEG_SLOPE = 0.01    # nn.LeakyReLU default negative_slope


def _round_up(a, b):
    return (a + b - 1) // b * b


def _conv_in_lrelu_kernel(p_ref, w_ref, o_ref, *, hw, use_in, relu):
    """One (sample n, cout-tile c, hw-tile t) grid step.

    p_ref: (1, K, THW)     bf16 packed conv taps (im2col), HW lane-dense
    w_ref: (TC, K)         bf16 flattened conv weights for this Cout tile
    o_ref: (1, TC, HWpad)  f32 output block, VMEM-resident across t
    """
    t = pl.program_id(2)
    thw = p_ref.shape[2]
    hw_pad = o_ref.shape[2]
    tc = o_ref.shape[1]
    n_chunks = hw_pad // thw
    needs_mask = hw_pad != hw

    col0 = pl.multiple_of(t * thw, 128)
    # Single fused-tap matmul: (TC, K) x (K, THW) -> (TC, THW), f32 accumulate.
    acc = jnp.dot(w_ref[...], p_ref[0], preferred_element_type=jnp.float32)
    o_ref[0, :, pl.ds(col0, thw)] = acc

    if use_in or relu:
        # Epilogue on the last hw tile: the whole (TC, HWpad) block is resident
        # in VMEM, so InstanceNorm + LeakyReLU is a chunked in-VMEM pass (no
        # second HBM pass, bounded vreg pressure per chunk).
        @pl.when(t == pl.num_programs(2) - 1)
        def _():
            if use_in:
                inv_hw = 1.0 / hw

                def _masked(i, v):
                    if not needs_mask:
                        return v
                    cols = i * thw + lax.broadcasted_iota(
                        jnp.int32, (1, thw), 1)
                    return jnp.where(cols < hw, v, 0.0)

                def sum_body(i, s):
                    c0 = pl.multiple_of(i * thw, 128)
                    y = o_ref[0, :, pl.ds(c0, thw)]
                    return s + jnp.sum(_masked(i, y), axis=1, keepdims=True)

                total = lax.fori_loop(0, n_chunks, sum_body,
                                      jnp.zeros((tc, 1), jnp.float32))
                mean = total * inv_hw

                def var_body(i, s):
                    c0 = pl.multiple_of(i * thw, 128)
                    y = o_ref[0, :, pl.ds(c0, thw)] - mean
                    return s + jnp.sum(_masked(i, y * y), axis=1, keepdims=True)

                var = lax.fori_loop(0, n_chunks, var_body,
                                    jnp.zeros((tc, 1), jnp.float32)) * inv_hw
                scale = lax.rsqrt(var + EPS)

            @pl.loop(0, n_chunks)
            def _(i):
                c0 = pl.multiple_of(i * thw, 128)
                y = o_ref[0, :, pl.ds(c0, thw)]
                if use_in:
                    y = (y - mean) * scale
                if relu:
                    y = jnp.maximum(y, NEG_SLOPE * y)   # LeakyReLU
                o_ref[0, :, pl.ds(c0, thw)] = y


def _choose_cout_tile(cout, hw_pad, out_budget_bytes, batch):
    """Pick a Cout tile: a multiple-of-8 divisor of Cout (or Cout itself)."""
    cands = [d for d in range(8, cout + 1, 8) if cout % d == 0]
    if cout not in cands:
        cands.append(cout)   # full-dim block is always a legal BlockSpec dim
    cands = sorted(set(cands))

    def fits(tc):
        # double-buffered resident f32 output block for this Cout tile
        return 2 * _round_up(tc, 8) * hw_pad * 4 <= out_budget_bytes

    fitting = [tc for tc in cands if fits(tc)]
    if not fitting:
        # TODO(synk): if even the smallest Cout tile's resident block misses
        # VMEM, stream HW twice (conv pass + norm pass) instead.
        fitting = [cands[0]]
    tc = fitting[-1]
    if batch < 2 and len(fitting) > 1 and tc == cout:
        # Give the second TensorCore (v7x) parallel work even at batch 1.
        tc = fitting[-2]
    return tc


def basic_conv_in(x_nchw, weight_oihw, *, stride=1, padding=1, use_in=True,
                  relu=True, conv_dtype=jnp.bfloat16):
    """Forward of BasicConv_IN: Conv2d(bias=False) [+InstanceNorm2d] [+LeakyReLU].

    x_nchw:      (N, Cin, H, W)       float32
    weight_oihw: (Cout, Cin, KH, KW)  float32
    returns      (N, Cout, Ho, Wo)    float32

    Conv operands are fed to the MXU in `conv_dtype` (bf16 by default) with
    f32 accumulation; IN / LeakyReLU math is f32.
    """
    # TODO(synk): the deconv (ConvTranspose2d) and is_3d (Conv3d/InstanceNorm3d)
    # branches of the PyTorch module are not implemented.
    N, Cin, H, W = x_nchw.shape
    Cout, Cin2, KH, KW = weight_oihw.shape
    assert Cin == Cin2

    Ho = (H + 2 * padding - KH) // stride + 1
    Wo = (W + 2 * padding - KW) // stride + 1
    HW = Ho * Wo
    K = KH * KW * Cin

    # --- wrapper-side tap packing: K (=KH*KW*Cin) on sublanes, HW on lanes ---
    # For small Cin this is the lane-dense layout the MXU wants; the KH*KW
    # shifted slices become zero in-kernel relayout work and a single K-wide
    # contraction.  stride>1 is folded here so in-kernel access is unit-stride.
    # TODO(synk): for large Cin the KH*KW x HBM blow-up of the packed patches
    # outweighs the layout win; switch to an in-kernel shifted-matmul with a
    # streamed, haloed row tile in that regime.
    xp = jnp.pad(x_nchw, ((0, 0), (0, 0), (padding, padding),
                          (padding, padding))).astype(conv_dtype)
    taps = []
    for ki in range(KH):
        for kj in range(KW):
            sl = xp[:, :, ki:ki + (Ho - 1) * stride + 1:stride,
                    kj:kj + (Wo - 1) * stride + 1:stride]      # (N, Cin, Ho, Wo)
            taps.append(sl.reshape(N, Cin, HW))
    patches = jnp.concatenate(taps, axis=1)                     # (N, K, HW)

    # (Cout, Cin, KH, KW) -> (Cout, KH*KW*Cin), matching the patch K ordering.
    w_flat = jnp.transpose(weight_oihw, (0, 2, 3, 1)).reshape(Cout, K)
    w_flat = w_flat.astype(conv_dtype)

    # --- tiling ---
    hw_pad = _round_up(HW, 128)
    try:
        vmem_cap = int(pltpu.get_tpu_info().vmem_capacity_bytes)
    except Exception:
        vmem_cap = 64 << 20        # conservative (v7x per-TC VMEM)

    TC = _choose_cout_tile(Cout, hw_pad, int(0.45 * vmem_cap), N)
    NC = Cout // TC

    # hw tile: a multiple of 128 dividing hw_pad, sized so the (TC, THW) f32
    # matmul result stays well inside the vreg file (~<=192 KiB).
    target_thw = max(128, min(2048,
                              ((192 * 1024) // (4 * max(TC, 1))) // 128 * 128))
    m = hw_pad // 128
    d = 1
    for cand in range(1, max(1, target_thw // 128) + 1):
        if m % cand == 0:
            d = cand
    THW = 128 * d
    T = hw_pad // THW

    if hw_pad != HW:
        patches = jnp.pad(patches, ((0, 0), (0, 0), (0, hw_pad - HW)))

    kernel = functools.partial(_conv_in_lrelu_kernel, hw=HW,
                               use_in=bool(use_in), relu=bool(relu))

    # VMEM budget from the actual (sublane/lane padded) block footprints.
    dt_bytes = jnp.dtype(conv_dtype).itemsize
    sub = (32 // (8 * dt_bytes)) * 8                       # 8 f32 / 16 bf16
    est = (2 * _round_up(K, sub) * THW * dt_bytes                    # patches
           + 2 * _round_up(TC, sub) * _round_up(K, 128) * dt_bytes   # weights
           + 2 * _round_up(TC, 8) * hw_pad * 4)                      # out block
    vmem_limit = int(min(max(2 * est + (8 << 20), 32 << 20),
                         int(0.9 * vmem_cap)))

    out = pl.pallas_call(
        kernel,
        out_shape=jax.ShapeDtypeStruct((N, Cout, hw_pad), jnp.float32),
        grid_spec=pltpu.PrefetchScalarGridSpec(
            num_scalar_prefetch=0,
            grid=(N, NC, T),
            in_specs=[
                # hw tiles of the packed patches are streamed (double-buffered)
                # by the pipeline; only the (TC, HWpad) output stays resident.
                pl.BlockSpec((1, K, THW), lambda n, c, t: (n, 0, t)),
                pl.BlockSpec((TC, K), lambda n, c, t: (c, 0)),
            ],
            out_specs=pl.BlockSpec((1, TC, hw_pad), lambda n, c, t: (n, c, 0)),
        ),
        compiler_params=pltpu.CompilerParams(
            dimension_semantics=("parallel", "parallel", "arbitrary"),
            vmem_limit_bytes=vmem_limit),
    )(patches, w_flat)

    # (N, Cout, HWpad) -> (N, Cout, Ho, Wo): drop lane padding + free reshape.
    return out[:, :, :HW].reshape(N, Cout, Ho, Wo)


def _reference(x_nchw, weight_oihw, stride=1, padding=1, use_in=True, relu=True):
    y = lax.conv_general_dilated(
        x_nchw, weight_oihw, window_strides=(stride, stride),
        padding=((padding, padding), (padding, padding)),
        dimension_numbers=("NCHW", "OIHW", "NCHW"),
        precision=lax.Precision.HIGHEST)
    if use_in:
        mean = jnp.mean(y, axis=(2, 3), keepdims=True)
        var = jnp.mean((y - mean) ** 2, axis=(2, 3), keepdims=True)
        y = (y - mean) * lax.rsqrt(var + EPS)
    if relu:
        y = jnp.where(y >= 0, y, NEG_SLOPE * y)
    return y


if __name__ == "__main__":
    # BasicConv_IN(in_channels=4, out_channels=8, kernel_size=3, stride=1, padding=1)
    N, Cin, H, W = 2, 4, 16, 16
    Cout, KH, KW = 8, 3, 3

    key = jax.random.PRNGKey(0)
    k1, k2 = jax.random.split(key)
    x = jax.random.normal(k1, (N, Cin, H, W), dtype=jnp.float32)
    fan_in = Cin * KH * KW
    weight = jax.random.normal(k2, (Cout, Cin, KH, KW), dtype=jnp.float32)
    weight = weight * (1.0 / jnp.sqrt(fan_in))

    # Quantize operands to bf16-representable values so the bf16-fed kernel
    # and the f32 reference see identical inputs (isolates kernel correctness).
    # NOTE: with arbitrary f32 inputs the bf16 MXU path differs slightly from
    # PyTorch's f32 Conv2d.
    xq = x.astype(jnp.bfloat16).astype(jnp.float32)
    wq = weight.astype(jnp.bfloat16).astype(jnp.float32)

    # stride=1, padding=1 (HW = 256, no lane padding)
    out1 = jax.block_until_ready(basic_conv_in(xq, wq, stride=1, padding=1))
    ref1 = _reference(xq, wq, stride=1, padding=1)
    assert out1.shape == (N, Cout, H, W), out1.shape
    err1 = float(jnp.max(jnp.abs(out1 - ref1)))
    assert err1 < 1e-2, err1

    # stride=2, padding=1 (HW = 64 -> exercises lane padding + masked IN stats)
    out2 = jax.block_until_ready(basic_conv_in(xq, wq, stride=2, padding=1))
    ref2 = _reference(xq, wq, stride=2, padding=1)
    assert out2.shape == ref2.shape, (out2.shape, ref2.shape)
    err2 = float(jnp.max(jnp.abs(out2 - ref2)))
    assert err2 < 1e-2, err2

    print("KERNEL_OK")
</pallas_src>

<mosaic_0001>
module attributes {stable_mosaic.version = 11 : i64} {
  func.func @_conv_in_lrelu_kernel(%arg0: i32, %arg1: i32, %arg2: i32, %arg3: memref<1x36x256xbf16, #tpu.memory_space<vmem>>, %arg4: memref<8x36xbf16, #tpu.memory_space<vmem>>, %arg5: memref<1x8x256xf32, #tpu.memory_space<vmem>>) attributes {dimension_semantics = [#tpu.dimension_semantics<parallel>, #tpu.dimension_semantics<parallel>, #tpu.dimension_semantics<arbitrary>], iteration_bounds = array<i64: 2, 1, 1>, scalar_prefetch = 0 : i64, scratch_operands = 0 : i64, tpu.core_type = #tpu.core_type<tc>, window_params = [{transform_indices = @transform_0, window_bounds = array<i64: 1, 36, 256>}, {transform_indices = @transform_1, window_bounds = array<i64: 8, 36>}, {transform_indices = @transform_2, window_bounds = array<i64: 1, 8, 256>}]} {
    %c256_i32 = arith.constant 256 : i32
    %0 = arith.muli %arg2, %c256_i32 : i32
    %1 = tpu.assume_multiple %0, 128 : i32
    %c0 = arith.constant 0 : index
    %c0_0 = arith.constant 0 : index
    %2 = vector.load %arg4[%c0, %c0_0] : memref<8x36xbf16, #tpu.memory_space<vmem>>, vector<8x36xbf16>
    %c0_1 = arith.constant 0 : index
    %c0_2 = arith.constant 0 : index
    %c0_3 = arith.constant 0 : index
    %3 = vector.load %arg3[%c0_1, %c0_2, %c0_3] : memref<1x36x256xbf16, #tpu.memory_space<vmem>>, vector<1x36x256xbf16>
    %4 = vector.shape_cast %3 : vector<1x36x256xbf16> to vector<36x256xbf16>
    %cst = arith.constant dense<0.000000e+00> : vector<8x256xf32>
    %5 = tpu.matmul %2, %4, %cst {dimension_numbers = #tpu.dot_dimension_numbers<[1], [0], [0], [1], [0, 0, 1, 1], [], []>} : vector<8x36xbf16>, vector<36x256xbf16>, vector<8x256xf32> -> vector<8x256xf32>
    %c0_4 = arith.constant 0 : index
    %c0_5 = arith.constant 0 : index
    %6 = arith.index_cast %1 : i32 to index
    %7 = vector.load %arg5[%c0_4, %c0_5, %6] : memref<1x8x256xf32, #tpu.memory_space<vmem>>, vector<1x8x256xf32>
    %8 = vector.shape_cast %7 : vector<1x8x256xf32> to vector<8x256xf32>
    %9 = vector.shape_cast %5 : vector<8x256xf32> to vector<1x8x256xf32>
    tpu.vector_store %arg5[%c0_4, %c0_5, %6], %9 {strides = array<i32>} : memref<1x8x256xf32, #tpu.memory_space<vmem>>, vector<1x8x256xf32>,
    %c0_i32 = arith.constant 0 : i32
    %10 = arith.cmpi eq, %arg2, %c0_i32 : i32
    %11 = arith.extui %10 : i1 to i32
    %c0_i32_6 = arith.constant 0 : i32
    %12 = arith.cmpi ne, %11, %c0_i32_6 : i32
    scf.if %12 {
      %cst_7 = arith.constant 0.000000e+00 : f32
      %13 = vector.broadcast %cst_7 : f32 to vector<8x1xf32>
      %c0_i32_8 = arith.constant 0 : i32
      %c256_i32_9 = arith.constant 256 : i32
      %14 = arith.muli %c0_i32_8, %c256_i32_9 : i32
      %15 = tpu.assume_multiple %14, 128 : i32
      %c0_10 = arith.constant 0 : index
      %c0_11 = arith.constant 0 : index
      %16 = arith.index_cast %15 : i32 to index
      %17 = vector.load %arg5[%c0_10, %c0_11, %16] : memref<1x8x256xf32, #tpu.memory_space<vmem>>, vector<1x8x256xf32>
      %18 = vector.shape_cast %17 : vector<1x8x256xf32> to vector<8x256xf32>
      %cst_12 = arith.constant dense<0.000000e+00> : vector<8xf32>
      %19 = vector.multi_reduction <add>, %18, %cst_12 [1] : vector<8x256xf32> to vector<8xf32>
      %20 = vector.shape_cast %19 : vector<8xf32> to vector<8x1xf32>
      %21 = arith.addf %13, %20 : vector<8x1xf32>
      %c1_i32 = arith.constant 1 : i32
      %cst_13 = arith.constant 3.906250e-03 : f32
      %22 = vector.broadcast %cst_13 : f32 to vector<8x1xf32>
      %23 = arith.mulf %21, %22 : vector<8x1xf32>
      %cst_14 = arith.constant 0.000000e+00 : f32
      %24 = vector.broadcast %cst_14 : f32 to vector<8x1xf32>
      %c0_i32_15 = arith.constant 0 : i32
      %c256_i32_16 = arith.constant 256 : i32
      %25 = arith.muli %c0_i32_15, %c256_i32_16 : i32
      %26 = tpu.assume_multiple %25, 128 : i32
      %c0_17 = arith.constant 0 : index
      %c0_18 = arith.constant 0 : index
      %27 = arith.index_cast %26 : i32 to index
      %28 = vector.load %arg5[%c0_17, %c0_18, %27] : memref<1x8x256xf32, #tpu.memory_space<vmem>>, vector<1x8x256xf32>
      %29 = vector.shape_cast %28 : vector<1x8x256xf32> to vector<8x256xf32>
      %30 = vector.broadcast %23 : vector<8x1xf32> to vector<8x256xf32>
      %31 = arith.subf %29, %30 : vector<8x256xf32>
      %32 = arith.mulf %31, %31 : vector<8x256xf32>
      %cst_19 = arith.constant dense<0.000000e+00> : vector<8xf32>
      %33 = vector.multi_reduction <add>, %32, %cst_19 [1] : vector<8x256xf32> to vector<8xf32>
      %34 = vector.shape_cast %33 : vector<8xf32> to vector<8x1xf32>
      %35 = arith.addf %24, %34 : vector<8x1xf32>
      %c1_i32_20 = arith.constant 1 : i32
      %cst_21 = arith.constant 3.906250e-03 : f32
      %36 = vector.broadcast %cst_21 : f32 to vector<8x1xf32>
      %37 = arith.mulf %35, %36 : vector<8x1xf32>
      %cst_22 = arith.constant 9.99999974E-6 : f32
      %38 = vector.broadcast %cst_22 : f32 to vector<8x1xf32>
      %39 = arith.addf %37, %38 : vector<8x1xf32>
      %40 = math.rsqrt %39 : vector<8x1xf32>
      %c0_i32_23 = arith.constant 0 : i32
      %c1_i32_24 = arith.constant 1 : i32
      %41 = arith.muli %c0_i32_23, %c1_i32_24 : i32
      %c0_i32_25 = arith.constant 0 : i32
      %42 = arith.addi %c0_i32_25, %41 : i32
      %c256_i32_26 = arith.constant 256 : i32
      %43 = arith.muli %42, %c256_i32_26 : i32
      %44 = tpu.assume_multiple %43, 128 : i32
      %c0_27 = arith.constant 0 : index
      %c0_28 = arith.constant 0 : index
      %45 = arith.index_cast %44 : i32 to index
      %46 = vector.load %arg5[%c0_27, %c0_28, %45] : memref<1x8x256xf32, #tpu.memory_space<vmem>>, vector<1x8x256xf32>
      %47 = vector.shape_cast %46 : vector<1x8x256xf32> to vector<8x256xf32>
      %48 = vector.broadcast %23 : vector<8x1xf32> to vector<8x256xf32>
      %49 = arith.subf %47, %48 : vector<8x256xf32>
      %50 = vector.broadcast %40 : vector<8x1xf32> to vector<8x256xf32>
      %51 = arith.mulf %49, %50 : vector<8x256xf32>
      %cst_29 = arith.constant 0.00999999977 : f32
      %52 = vector.broadcast %cst_29 : f32 to vector<8x256xf32>
      %53 = arith.mulf %52, %51 : vector<8x256xf32>
      %54 = arith.maximumf %51, %53 : vector<8x256xf32>
      %c0_30 = arith.constant 0 : index
      %c0_31 = arith.constant 0 : index
      %55 = arith.index_cast %44 : i32 to index
      %56 = vector.load %arg5[%c0_30, %c0_31, %55] : memref<1x8x256xf32, #tpu.memory_space<vmem>>, vector<1x8x256xf32>
      %57 = vector.shape_cast %56 : vector<1x8x256xf32> to vector<8x256xf32>
      %58 = vector.shape_cast %54 : vector<8x256xf32> to vector<1x8x256xf32>
      tpu.vector_store %arg5[%c0_30, %c0_31, %55], %58 {strides = array<i32>} : memref<1x8x256xf32, #tpu.memory_space<vmem>>, vector<1x8x256xf32>,
      %c1_i32_32 = arith.constant 1 : i32
    } else {
    }
    return
  }
  func.func @transform_0(%arg0: i32, %arg1: i32, %arg2: i32) -> (i32, i32, i32) {
    %c0_i32 = arith.constant 0 : i32
    %c0_i32_0 = arith.constant 0 : i32
    return %arg0, %c0_i32, %arg2 : i32, i32, i32
  }
  func.func @transform_1(%arg0: i32, %arg1: i32, %arg2: i32) -> (i32, i32) {
    %c0_i32 = arith.constant 0 : i32
    %c0_i32_0 = arith.constant 0 : i32
    return %arg1, %c0_i32 : i32, i32
  }
  func.func @transform_2(%arg0: i32, %arg1: i32, %arg2: i32) -> (i32, i32, i32) {
    %c0_i32 = arith.constant 0 : i32
    %c0_i32_0 = arith.constant 0 : i32
    return %arg0, %arg1, %c0_i32 : i32, i32, i32
  }
}

</mosaic_0001>

<llo_original>
// kernel: tpu_custom_call.1
$region0: #{tpu_custom_call.1}
  #allocation0 [shape = 'u32[]', space=smem, size = 0x4, offset = 0x4, fixed_abs, tag = 'smem constant byte address 0x4 - core index']
  #allocation1 [shape = 'u32[144,128]{1,0:T(1,128)}', space=vmem, size = 0x12000, scoped, tag = 'internal scratch']
  %s0 = inlined_call_operand.vmem [shape: bf16[2,36,256], index: 0, kind: input, shape index: {}]
  %s1 = inlined_call_operand.vmem [shape: bf16[8,36], index: 1, kind: input, shape index: {}]
  %s2 = inlined_call_operand.hbm [shape: f32[2,8,256], index: 2, kind: output, shape index: {}]
  %s3 = sld [smem:[#allocation0]]
  $region45: #{tpu_custom_call.1} parent=0
    _
  %s5 = ssub.s32 1, %s3
  %s6 = scalar_select 0, %s5, %s3
  $region1: #{tpu_custom_call.1} parent=0
    #allocation2 [shape = 'u8[16384]{0}', space=vmem, size = 0x4000, scoped, tag = 'output window, operand 0']
    #allocation3 [shape = 's32[2]{0}', space=sflag, size = 0x8, scoped, tag = 'scoped memory for tpu_custom_call.1']
    %7 = vsyncpa [#allocation3], 0
    %s8 = scalar_lea.sflag [#allocation3], 1
    %9 = vsyncpa %s8, 0
    loop: start=0, step=1, limit=4
    $region2: #{tpu_custom_call.1} parent=1 // loop_pre_header
      _
    $region3: #{tpu_custom_call.1} parent=1 // loop_header
      %s11 = sphi 0, %s15
      %p12 = scmp.ge.s32.totalorder %s11, 4
      %s18 = sphi 0, %s37
      %s19 = sphi 0, %s33
      %s20 = sphi 0, %s29
      %s21 = sphi 0, %s18
      %s22 = sphi 0, %s19
      %s23 = sphi 0, %s20
      %s24 = sphi 0, %s21
      %s25 = sphi 0, %s22
      %s26 = sphi 0, %s23
      %s42 = sphi 0, %s44
      %s45 = sphi 0, %s42
      %s46 = sphi 0, %s45
      %s62 = sphi 0, %s46
      %s68 = sphi 0, %s70
      %s71 = sphi 0, %s68
      %s72 = sphi 0, %s71
      %s88 = sphi 0, %s72
      %s96 = sphi 0, %s98
      %s99 = sphi 0, %s96
      %s100 = sphi 0, %s99
      %s116 = sphi 0, %s100
    $region4: #{tpu_custom_call.1} parent=1 // loop_header_branch
      %14 = sbr.rel (%p12) target = $region8
    $region5: #{tpu_custom_call.1} parent=1 // loop_body
      %s16 = ssub.s32 %s11, 1
      %s17 = ssub.s32 %s11, 2
      %s27 = sadd.s32 1, %s20
      %p28 = scmp.ge.s32.totalorder %s27, 1
      %s29 = scalar_select %p28, 0, %s27
      %s30 = sadd.s32 1, %s19
      %s31 = scalar_select %p28, %s30, %s19
      %p32 = scmp.ge.s32.totalorder %s31, 1
      %s33 = scalar_select %p32, 0, %s31
      %s34 = sadd.s32 1, %s18
      %s35 = scalar_select %p32, %s34, %s18
      %p36 = scmp.ge.s32.totalorder %s35, 2
      %s37 = scalar_select %p36, 0, %s35
      %s38 = ssub.s32 %s18, %s37
      %s39 = ssub.s32 %s20, %s29
      %s40 = sor.u32 %s38, %s39
      %p41 = scmp.eq.s32.totalorder %s40, 0
      %s43 = sadd.s32 %s42, 1
      %s44 = scalar_select %p41, %s42, %s43
      %p47 = pneg %p41
      %p48 = scmp.eq.s32.totalorder %s11, 1
      %p49 = por %p47, %p48
      %p50 = scmp.ne.s32.totalorder %s42, %s45
      %p51 = scmp.eq.s32.totalorder %s11, 0
      %p52 = por %p50, %p51
      %p53 = scmp.ne.s32.totalorder %s42, %s45
      %p54 = scmp.eq.s32.totalorder %s16, 1
      %p55 = por %p53, %p54
      %p56 = scmp.ne.s32.totalorder %s45, %s46
      %p57 = scmp.eq.s32.totalorder %s16, 0
      %p58 = por %p56, %p57
      %p59 = scmp.ne.s32.totalorder %s45, %s46
      %p60 = scmp.eq.s32.totalorder %s17, 1
      %p61 = por %p59, %p60
      %p63 = scmp.ne.s32.totalorder %s46, %s62
      %p64 = scmp.eq.s32.totalorder %s17, 0
      %p65 = por %p63, %p64
      %s66 = ssub.s32 %s19, %s33
      %p67 = scmp.eq.s32.totalorder %s66, 0
      %s69 = sadd.s32 %s68, 1
      %s70 = scalar_select %p67, %s68, %s69
      %p73 = pneg %p67
      %p74 = scmp.eq.s32.totalorder %s11, 1
      %p75 = por %p73, %p74
      %p76 = scmp.ne.s32.totalorder %s68, %s71
      %p77 = scmp.eq.s32.totalorder %s11, 0
      %p78 = por %p76, %p77
      %p79 = scmp.ne.s32.totalorder %s68, %s71
      %p80 = scmp.eq.s32.totalorder %s16, 1
      %p81 = por %p79, %p80
      %p82 = scmp.ne.s32.totalorder %s71, %s72
      %p83 = scmp.eq.s32.totalorder %s16, 0
      %p84 = por %p82, %p83
      %p85 = scmp.ne.s32.totalorder %s71, %s72
      %p86 = scmp.eq.s32.totalorder %s17, 1
      %p87 = por %p85, %p86
      %p89 = scmp.ne.s32.totalorder %s72, %s88
      %p90 = scmp.eq.s32.totalorder %s17, 0
      %p91 = por %p89, %p90
      %s92 = ssub.s32 %s18, %s37
      %s93 = ssub.s32 %s19, %s33
      %s94 = sor.u32 %s92, %s93
      %p95 = scmp.eq.s32.totalorder %s94, 0
      %s97 = sadd.s32 %s96, 1
      %s98 = scalar_select %p95, %s96, %s97
      %p101 = pneg %p95
      %p102 = scmp.eq.s32.totalorder %s11, 1
      %p103 = por %p101, %p102
      %p104 = scmp.ne.s32.totalorder %s96, %s99
      %p105 = scmp.eq.s32.totalorder %s11, 0
      %p106 = por %p104, %p105
      %p107 = scmp.ne.s32.totalorder %s96, %s99
      %p108 = scmp.eq.s32.totalorder %s16, 1
      %p109 = por %p107, %p108
      %p110 = scmp.ne.s32.totalorder %s99, %s100
      %p111 = scmp.eq.s32.totalorder %s16, 0
      %p112 = por %p110, %p111
      %p113 = scmp.ne.s32.totalorder %s99, %s100
      %p114 = scmp.eq.s32.totalorder %s17, 1
      %p115 = por %p113, %p114
      %p117 = scmp.ne.s32.totalorder %s100, %s116
      %p118 = scmp.eq.s32.totalorder %s17, 0
      %p119 = por %p117, %p118
      %p120 = scmp.le.s32.totalorder 1, %s11
      %p121 = scmp.lt.s32.totalorder %s11, 3
      %p122 = pnand %p120, %p121
      %p123 = pneg %p122
      // Predicated region
      $region9: #{tpu_custom_call.1} parent=5 // pred_check
        _
      $region10: #{tpu_custom_call.1} parent=5 // pred_check_branch
        %125 = sbr.rel (%p122) target = $region12
      $region11: #{tpu_custom_call.1} parent=5 // pred_region
        %s126 = ssub.s32 %s11, 1
        // Predicated region
        $region13: #{tpu_custom_call.1} parent=11 // pred_check
          %p127 = pneg %p84
        $region14: #{tpu_custom_call.1} parent=11 // pred_check_branch
          %129 = sbr.rel (%p127) target = $region16
        $region15: #{tpu_custom_call.1} parent=11 // pred_region
          %p130 = scmp.lt.s32.totalorder %s22, 0
          %s131 = scalar_select %p130, %s22, 0
          %s132 = smul.addr %s131, 4
          %s133 = scalar_lea.vmem %s1, %s132
        $region16: #{tpu_custom_call.1} parent=11 // pred_fallthru
          _
      $region12: #{tpu_custom_call.1} parent=5 // pred_fallthru
        _
      %p134 = scmp.lt.s32.totalorder %s11, 2
      // Predicated region
      $region17: #{tpu_custom_call.1} parent=5 // pred_check
        %p135 = pneg %p134
      $region18: #{tpu_custom_call.1} parent=5 // pred_check_branch
        %137 = sbr.rel (%p135) target = $region20
      $region19: #{tpu_custom_call.1} parent=5 // pred_region
        // Predicated region
        $region21: #{tpu_custom_call.1} parent=19 // pred_check
          %p138 = pneg %p52
        $region22: #{tpu_custom_call.1} parent=19 // pred_check_branch
          %140 = sbr.rel (%p138) target = $region24
        $region23: #{tpu_custom_call.1} parent=19 // pred_region
          %s141 = smul.u32 2, %s20
          %p142 = scmp.lt.s32.totalorder %s18, 1
          %s143 = scalar_select %p142, %s18, 1
          %p144 = scmp.lt.s32.totalorder %s141, 1
          %s145 = scalar_select %p144, %s141, 1
          %s146 = smul.addr %s143, 10
          %s147 = sadd.s32 %s145, %s146
          %s148 = smul.addr %s147, 4
          %s149 = scalar_lea.vmem %s0, %s148
          %s150 = smul.u32 2, %s20
        $region24: #{tpu_custom_call.1} parent=19 // pred_fallthru
          _
      $region20: #{tpu_custom_call.1} parent=5 // pred_fallthru
        _
      %p151 = scmp.le.s32.totalorder 1, %s11
      %p152 = scmp.lt.s32.totalorder %s11, 3
      %p153 = pnand %p151, %p152
      %p154 = pneg %p153
      // Predicated region
      $region25: #{tpu_custom_call.1} parent=5 // pred_check
        _
      $region26: #{tpu_custom_call.1} parent=5 // pred_check_branch
        %156 = sbr.rel (%p153) target = $region28
      $region27: #{tpu_custom_call.1} parent=5 // pred_region
        %s157 = ssub.s32 %s11, 1
        %s158 = smul.u32 2, %s23
        %p159 = scmp.lt.s32.totalorder %s21, 1
        %s160 = scalar_select %p159, %s21, 1
        %p161 = scmp.lt.s32.totalorder %s158, 1
        %s162 = scalar_select %p161, %s158, 1
        %s163 = smul.addr %s160, 10
        %s164 = sadd.s32 %s162, %s163
        %s165 = smul.addr %s164, 4
        %s166 = scalar_lea.vmem %s0, %s165
        %p167 = pneg %p58
        %p168 = pneg %p55
        %p169 = scmp.lt.s32.totalorder %s22, 0
        %s170 = scalar_select %p169, %s22, 0
        %s171 = smul.addr %s170, 4
        %s172 = scalar_lea.vmem %s1, %s171
        %p173 = pneg %p84
        %p174 = pneg %p81
        %p175 = pneg %p112
        %p176 = pneg %p109
        %s177 = sand.u32 %s99, 1
        %s178 = scalar_lea.sflag [#allocation3], %s177
        %s179 = sand.u32 %s99, 1
        %s180 = smul.addr %s179, 16
        %s181 = scalar_lea.vmem [#allocation2], %s180
        %s182 = smul.u32 2, %s23
        %p183 = scmp.lt.s32.totalorder %s21, 1
        %s184 = scalar_select %p183, %s21, 1
        %p185 = scmp.lt.s32.totalorder %s182, 1
        %s186 = scalar_select %p185, %s182, 1
        %s187 = smul.addr %s184, 10
        %s188 = sadd.s32 %s186, %s187
        %s189 = smul.addr %s188, 4
        %s190 = scalar_lea.vmem %s0, %s189
        %s191 = smul.u32 2, %s23
        %p192 = scmp.lt.s32.totalorder %s22, 0
        %s193 = scalar_select %p192, %s22, 0
        %s194 = smul.addr %s193, 4
        %s195 = scalar_lea.vmem %s1, %s194
        %s197 = smul.u32 %s23, 256
        %v198 = vld [vmem:[%s195] sm:$0xf]
        %v199 = vld [vmem:[%s190] sm:$0xff]
        %v200 = vld [vmem:[%s190 + $0x8] sm:$0xff]
        %v201 = vld [vmem:[%s190 + $0x10] sm:$0xff]
        %v202 = vld [vmem:[%s190 + $0x18] sm:$0xff]
        %v203 = vld [vmem:[%s190 + $0x20] sm:$0x33]
        %v209 = vunpack.c.l.b16 %v199
        %v210 = vunpack.c.h.b16 %v199
        %v211 = vunpack.c.l.b16 %v200
        %v212 = vunpack.c.h.b16 %v200
        %v213 = vunpack.c.l.b16 %v201
        %v214 = vunpack.c.h.b16 %v201
        %v215 = vunpack.c.l.b16 %v202
        %v216 = vunpack.c.h.b16 %v202
        %v217 = vunpack.c.l.b16 %v203
        %v218 = vunpack.c.h.b16 %v203
        %v219 = vpack.c.b16 %v211, %v209
        %v220 = vpack.c.b16 %v212, %v210
        %v221 = vpack.c.b16 %v215, %v213
        %v222 = vpack.c.b16 %v216, %v214
        %v223 = vpack.c.b16 %v217, %v217
        %v224 = vpack.c.b16 %v218, %v218
        %vm229 = vcmask 293888
        %v231 = vsel %vm229, %v198, 0
        %vm233 = vcmask 1041408
        %v235 = vsel %vm233, %v223, 0
        %v238 = vsel %vm233, %v224, 0
        %240 = vmatprep.subr.bf16.mxu0 0
        %241 = vmatpush1.bf16.msra.mxu0 0
        %242 = vmatprep.subr.bf16.mxu0 0
        %243 = vmatpush1.bf16.msra.mxu0 0
        %244 = vmatprep.subr.bf16.mxu0 0
        %245 = vmatpush1.bf16.msra.mxu0 0
        %246 = vmatprep.subr.bf16.mxu0 0
        %247 = vmatpush1.bf16.msra.mxu0 0
        %248 = vmatprep.subr.bf16.mxu0 0
        %249 = vmatpush1.bf16.msra.mxu0 0
        %250 = vmatprep.subr.bf16.mxu0 %v238
        %251 = vmatpush1.bf16.msra.mxu0 %v235
        %252 = vmatprep.subr.bf16.mxu0 %v222
        %253 = vmatpush1.bf16.msra.mxu0 %v221
        %254 = vmatprep.subr.bf16.mxu0 %v220
        %255 = vmatpush1.bf16.msra.mxu0 %v219
        %256 = vmatprep.subr.bf16.mxu0 0
        %257 = vmatpush2.bf16.msra.mxu0 0
        %258 = vmatprep.subr.bf16.mxu0 0
        %259 = vmatpush2.bf16.msra.mxu0 0
        %260 = vmatprep.subr.bf16.mxu0 0
        %261 = vmatpush2.bf16.msra.mxu0 0
        %262 = vmatprep.subr.bf16.mxu0 0
        %263 = vmatpush2.bf16.msra.mxu0 0
        %264 = vmatprep.subr.bf16.mxu0 0
        %265 = vmatpush2.bf16.msra.mxu0 0
        %266 = vmatprep.subr.bf16.mxu0 0
        %267 = vmatpush2.bf16.msra.mxu0 0
        %268 = vmatprep.subr.bf16.mxu0 0
        %269 = vmatpush2.bf16.msra.mxu0 0
        %270 = vmatprep.subr.bf16.mxu0 0
        %271 = vmatpush2.bf16.msra.mxu0 0
        %272 = vmatprep.mubr.bf16.mxu0 0
        %273 = vmatmul.mubr.bf16.gmra.mxu0 %v231
        %v274 = vpop.f32.mrf.mxu0
        %v275 = vadd.f32 0.0, %v274
        %v276 = vpop.f32.mrf.mxu0
        %v277 = vadd.f32 0.0, %v276
        %v278 = vpop.f32.mrf.mxu0
        %v279 = vpop.f32.mrf.mxu0
        %280 = vdwg.mxu0
        %s281 = sshra.s32 %s197, 7
        %s282 = sand.u32 %s197, 127
        %s283 = smul.addr %s281, 8
        %s284 = scalar_lea.vmem %s181, %s283 [#allocation2]
        %285 = vst [vmem:[%s284] sm:$0xff] %v275
        %286 = vst [vmem:[%s284 + $0x8] sm:$0xff] %v277
        %p287 = scmp.eq.s32.totalorder %s23, 0
        // Predicated region
        $region29: #{tpu_custom_call.1} parent=27 // pred_check
          %p288 = pneg %p287
        $region30: #{tpu_custom_call.1} parent=27 // pred_check_branch
          %290 = sbr.rel (%p288) target = $region32
        $region31: #{tpu_custom_call.1} parent=27 // pred_region
          %v291 = vld [vmem:[%s181] sm:$0xff]
          %v292 = vld [vmem:[%s181 + $0x8] sm:$0xff]
          %v293 = vadd.f32 %v291, %v292
          %294 = vadd.xlane.f32.xlu0 %v293
          %v295 = vpop.xlane.xlu0 %294
          %v296 = vadd.f32 %v295, 0.0
          %v297 = vmul.f32 %v296, 0.00390625
          %v298 = vsub.f32 %v291, %v297
          %v299 = vsub.f32 %v292, %v297
          %v300 = vmul.f32 %v298, %v298
          %v301 = vmul.f32 %v299, %v299
          %v302 = vadd.f32 %v300, %v301
          %303 = vadd.xlane.f32.xlu0 %v302
          %v304 = vpop.xlane.xlu0 %303
          %v305 = vadd.f32 %v304, 0.0
          %v306 = vmul.f32 %v305, 0.00390625
          %v307 = vadd.f32 %v306, 1e-05
          %v308 = vrsqrt.pop %v307
          %v309 = vmul.f32 %v298, %v308
          %v310 = vmul.f32 %v299, %v308
          %v311 = vmul.f32 %v309, 0.01
          %v312 = vmul.f32 %v310, 0.01
          %v313 = vmax.f32 %v309, %v311
          %v314 = vmax.f32 %v310, %v312
          %315 = vst [vmem:[%s181] sm:$0xff] %v313
          %316 = vst [vmem:[%s181 + $0x8] sm:$0xff] %v314
        $region32: #{tpu_custom_call.1} parent=27 // pred_fallthru
          _
        %s317 = sand.u32 %s99, 1
        %s318 = scalar_lea.sflag [#allocation3], %s317
        %s319 = sand.u32 %s99, 1
        %s320 = smul.addr %s319, 16
        %s321 = scalar_lea.vmem [#allocation2], %s320
        // Predicated region
        $region33: #{tpu_custom_call.1} parent=27 // pred_check
          %p322 = pneg %p109
        $region34: #{tpu_custom_call.1} parent=27 // pred_check_branch
          %324 = sbr.rel (%p322) target = $region36
        $region35: #{tpu_custom_call.1} parent=27 // pred_region
          %s326 = ssub.s32 256, 256
          %327 = vsyncadd %s318, %s326
          %s328 = smul.addr %s22, 2
          %s329 = smul.addr %s21, 2
          %s330 = sadd.s32 %s328, %s329
          %s331 = smul.addr %s330, 128
          %s332 = scalar_lea.hbm %s2, %s331
          %s334 = sshll.u32 %s321, 4
          %s335 = int_to_ptr.vmem [resolvable:$true] %s334
          %337 = dma.vmem_to_hbm [thread:$0]  %s335, 256, %s332, %s318
        $region36: #{tpu_custom_call.1} parent=27 // pred_fallthru
          _
      $region28: #{tpu_custom_call.1} parent=5 // pred_fallthru
        _
      %p338 = scmp.le.s32.totalorder 2, %s11
      // Predicated region
      $region37: #{tpu_custom_call.1} parent=5 // pred_check
        %p339 = pneg %p338
      $region38: #{tpu_custom_call.1} parent=5 // pred_check_branch
        %341 = sbr.rel (%p339) target = $region40
      $region39: #{tpu_custom_call.1} parent=5 // pred_region
        %s342 = ssub.s32 %s11, 2
        // Predicated region
        $region41: #{tpu_custom_call.1} parent=39 // pred_check
          %p343 = pneg %p115
        $region42: #{tpu_custom_call.1} parent=39 // pred_check_branch
          %345 = sbr.rel (%p343) target = $region44
        $region43: #{tpu_custom_call.1} parent=39 // pred_region
          %s346 = sand.u32 %s100, 1
          %s347 = scalar_lea.sflag [#allocation3], %s346
          %s348 = sand.u32 %s100, 1
          %s349 = smul.addr %s348, 16
          %s350 = scalar_lea.vmem [#allocation2], %s349
          %351 = dma.done %s347, 256
        $region44: #{tpu_custom_call.1} parent=39 // pred_fallthru
          _
      $region40: #{tpu_custom_call.1} parent=5 // pred_fallthru
        _
    $region6: #{tpu_custom_call.1} parent=1 // loop_footer
      %s15 = sadd.s32 1, %s11
    $region7: #{tpu_custom_call.1} parent=1 // loop_footer_branch
      %10 = sbr.rel target = $region3
    $region8: #{tpu_custom_call.1} parent=1 // loop_exit
      _
    %352 = vsyncpa [#allocation3], 1
    %s353 = scalar_lea.sflag [#allocation3], 1
    %354 = vsyncpa %s353, 1

</llo_original>
